<compile_context>
chip_gen: v7x
topology: tpu7x:2x2x1
jax: 0.10.0
libtpu: 0.0.40
codegen_flags: <defaults>
</compile_context>

<pallas_src>
import jax
import jax.numpy as jnp
from jax.experimental import pallas as pl
from jax.experimental.pallas import tpu as pltpu

_NEG_BIG = -1e30            # bias for padded vocab columns: exp() underflows to 0
_MIB = 1024 * 1024


def _round_up(x, m):
    return ((x + m - 1) // m) * m


def _vmem_capacity_bytes():
    """Physical VMEM of the attached TPU (fallback 64 MiB fits every gen)."""
    try:
        cap = int(getattr(pltpu.get_tpu_info(), "vmem_capacity_bytes", 0) or 0)
        if cap > 0:
            return cap
    except Exception:
        pass
    return 64 * _MIB


# ---------------------------------------------------------------------------
# Fused single-pass kernel: streamed-W matmul + online logsumexp with the
# (tm, V_p) log-prob slab resident in VMEM across the vocab sweep.
# grid = (token_tiles, vocab_tiles); vocab axis is last / "arbitrary".
# ---------------------------------------------------------------------------
def _fused_lm_head_kernel(x_ref, w_ref, b_ref, o_ref, m_sc, l_sc):
    vj = pl.program_id(1)
    tv = w_ref.shape[1]
    nvb = o_ref.shape[1] // tv           # static vocab-tile count

    @pl.when(vj == 0)
    def _init():
        m_sc[...] = jnp.full_like(m_sc, -jnp.inf)
        l_sc[...] = jnp.zeros_like(l_sc)

    # x/W already in compute dtype (cast once in the wrapper); f32 accumulate.
    logits = jnp.dot(x_ref[...], w_ref[...],
                     preferred_element_type=jnp.float32) + b_ref[...]

    # Stash raw logits into the resident output slab.  Statically-unrolled,
    # lane-aligned stores (one pl.when branch per vocab tile) — no dynamic
    # lane-offset addressing needed.
    val = logits.astype(o_ref.dtype)
    for j in range(nvb):
        @pl.when(vj == j)
        def _store(j=j):
            o_ref[:, j * tv:(j + 1) * tv] = val

    # Online max / sum-exp update (f32; EUP/XLU work hides under the MXU).
    m_old = m_sc[...]
    m_new = jnp.maximum(m_old, jnp.max(logits, axis=-1, keepdims=True))
    l_sc[...] = l_sc[...] * jnp.exp(m_old - m_new) + jnp.sum(
        jnp.exp(logits - m_new), axis=-1, keepdims=True)
    m_sc[...] = m_new

    @pl.when(vj == nvb - 1)
    def _finalize():
        lse = m_sc[...] + jnp.log(l_sc[...])
        o_ref[...] = (o_ref[...].astype(jnp.float32) - lse).astype(o_ref.dtype)


# ---------------------------------------------------------------------------
# Two-pass fallback.
# ---------------------------------------------------------------------------
def _logits_lse_kernel(x_ref, w_ref, b_ref, logits_ref, lse_ref, m_sc, l_sc):
    vj = pl.program_id(1)

    @pl.when(vj == 0)
    def _init():
        m_sc[...] = jnp.full_like(m_sc, -jnp.inf)
        l_sc[...] = jnp.zeros_like(l_sc)

    logits = jnp.dot(x_ref[...], w_ref[...],
                     preferred_element_type=jnp.float32) + b_ref[...]
    logits_ref[...] = logits.astype(logits_ref.dtype)

    m_old = m_sc[...]
    m_new = jnp.maximum(m_old, jnp.max(logits, axis=-1, keepdims=True))
    l_sc[...] = l_sc[...] * jnp.exp(m_old - m_new) + jnp.sum(
        jnp.exp(logits - m_new), axis=-1, keepdims=True)
    m_sc[...] = m_new

    @pl.when(vj == pl.num_programs(1) - 1)
    def _finalize():
        lse_ref[...] = m_sc[...] + jnp.log(l_sc[...])


def _subtract_lse_kernel(logits_ref, lse_ref, o_ref):
    o_ref[...] = (logits_ref[...].astype(jnp.float32)
                  - lse_ref[...]).astype(o_ref.dtype)


# ---------------------------------------------------------------------------
# Tile / mode planner (generation-aware via VMEM capacity).
# ---------------------------------------------------------------------------
def _plan(tokens, H, V, tm, tv, compute_dtype, out_dtype, force_two_pass):
    cb = jnp.dtype(compute_dtype).itemsize
    ob = jnp.dtype(out_dtype).itemsize
    cap = _vmem_capacity_bytes()
    vmem_limit = (cap * 3) // 4           # ~96 MiB on v5e/v6e, ~48 MiB on v7x
    budget = vmem_limit - 8 * _MIB        # headroom for Mosaic internal scratch

    sub = 16 if cb < 4 else 8             # sublane packing multiple for token tiles
    lane = 256 if V >= 256 else 128       # keep the 256-wide MXU fed

    # Big tm amortizes the per-token-tile W re-stream (intensity ~ tm flop/byte).
    if tm is None:
        tm = 1024 if budget >= 80 * _MIB else (512 if budget >= 32 * _MIB else 256)
    if tv is None:
        tv = 2048 if budget >= 80 * _MIB else (1024 if budget >= 32 * _MIB else 512)

    tm = max(sub, min(_round_up(tokens, sub), _round_up(tm, sub)))
    tv = max(128, min(_round_up(V, 128), _round_up(tv, 128)))

    def v_pad(tv_):
        return _round_up(V, tv_)

    def fused_bytes(tm_, tv_):
        # x, W, bias, resident output slab (all counted double-buffered) + scratch.
        return (2 * tm_ * H * cb + 2 * H * tv_ * cb + 2 * tv_ * 4
                + 2 * tm_ * v_pad(tv_) * ob + 4 * tm_ * 4)

    def pass1_bytes(tm_, tv_):
        return (2 * tm_ * H * cb + 2 * H * tv_ * cb + 2 * tv_ * 4
                + 2 * tm_ * tv_ * ob + 2 * tm_ * 4 + 4 * tm_ * 4)

    # ---- try the fused single-pass plan (kills the logits HBM round-trip) ----
    if not force_two_pass:
        tm_f, tv_f = tm, tv
        tm_floor = min(tm, 128)
        while tm_f > tm_floor and fused_bytes(tm_f, tv_f) > budget:
            tm_f -= sub
        while tv_f > lane and fused_bytes(tm_f, tv_f) > budget:
            tv_f -= lane
        nvb = v_pad(tv_f) // tv_f
        if fused_bytes(tm_f, tv_f) <= budget and nvb <= 32:
            return dict(mode="fused", tm=tm_f, tv=tv_f, vmem_limit=vmem_limit)

    # ---- two-pass fallback ---------------------------------------------------
    tm_p, tv_p = tm, tv
    while tv_p > lane and pass1_bytes(tm_p, tv_p) > budget:
        tv_p -= lane
    while tm_p > sub and pass1_bytes(tm_p, tv_p) > budget:
        tm_p -= sub

    tokens_p = _round_up(tokens, tm_p)
    Vp = v_pad(tv_p)

    # Pass 2 is pure streaming elementwise -> give it bigger lane-dense tiles.
    def pass2_bytes(tm_, tv_):
        return 2 * tm_ * tv_ * 2 * ob + 2 * tm_ * 4

    tm2, tv2 = tm_p, tv_p
    while tv2 * 2 <= Vp and Vp % (tv2 * 2) == 0 and pass2_bytes(tm2, 2 * tv2) <= budget:
        tv2 *= 2
    while (tm2 * 2 <= tokens_p and tokens_p % (tm2 * 2) == 0
           and pass2_bytes(2 * tm2, tv2) <= budget):
        tm2 *= 2

    return dict(mode="two_pass", tm=tm_p, tv=tv_p, tm2=tm2, tv2=tv2,
                vmem_limit=vmem_limit)


# ---------------------------------------------------------------------------
# Public wrapper.
# ---------------------------------------------------------------------------
def masked_language_model(x, w, b, *, tm=None, tv=None,
                          compute_dtype=jnp.bfloat16, out_dtype=None,
                          force_two_pass=False):
    """x: [B, S, H]; w: [H, V] (transpose of torch Linear weight); b: [V].
    Returns [B, S, V] log-probabilities (log_softmax over the vocab axis)."""
    B, S, H = x.shape
    Hw, V = w.shape
    assert H == Hw, "hidden size mismatch"
    if out_dtype is None:
        out_dtype = x.dtype

    tokens = B * S
    plan = _plan(tokens, H, V, tm, tv, compute_dtype, out_dtype, force_two_pass)
    tm, tv = plan["tm"], plan["tv"]

    tokens_p = _round_up(tokens, tm)
    V_p = _round_up(V, tv)
    grid = (tokens_p // tm, V_p // tv)

    # ---- wrapper-side layout / dtype plumbing (cheap one-shot XLA ops) ------
    x2d = x.reshape(tokens, H)
    if tokens_p != tokens:
        x2d = jnp.pad(x2d, ((0, tokens_p - tokens), (0, 0)))
    x2d = x2d.astype(compute_dtype)                 # cast once (not per vocab step)

    w_c = w.astype(compute_dtype)                   # halves the W HBM stream (bf16)
    b2d = b.astype(jnp.float32).reshape(1, V)
    if V_p != V:
        w_c = jnp.pad(w_c, ((0, 0), (0, V_p - V)))
        b2d = jnp.pad(b2d, ((0, 0), (0, V_p - V)), constant_values=_NEG_BIG)

    cparams = pltpu.CompilerParams(
        dimension_semantics=("parallel", "arbitrary"),
        vmem_limit_bytes=plan["vmem_limit"],
    )

    in_specs = [
        pl.BlockSpec((tm, H), lambda ti, vj: (ti, 0)),    # x token tile
        pl.BlockSpec((H, tv), lambda ti, vj: (0, vj)),    # W vocab tile (streamed)
        pl.BlockSpec((1, tv), lambda ti, vj: (0, vj)),    # bias tile
    ]
    scratch = [pltpu.VMEM((tm, 1), jnp.float32),          # running max
               pltpu.VMEM((tm, 1), jnp.float32)]          # running sum-exp

    if plan["mode"] == "fused":
        out_p = pl.pallas_call(
            _fused_lm_head_kernel,
            out_shape=jax.ShapeDtypeStruct((tokens_p, V_p), out_dtype),
            grid_spec=pltpu.PrefetchScalarGridSpec(
                num_scalar_prefetch=0, grid=grid,
                in_specs=in_specs,
                out_specs=pl.BlockSpec((tm, V_p), lambda ti, vj: (ti, 0)),
                scratch_shapes=scratch),
            compiler_params=cparams,
        )(x2d, w_c, b2d)
        return out_p[:tokens, :V].reshape(B, S, V)

    # ---- two-pass fallback ---------------------------------------------------
    inter_dtype = out_dtype        # halves the intermediate stream when bf16
    logits, lse = pl.pallas_call(
        _logits_lse_kernel,
        out_shape=(jax.ShapeDtypeStruct((tokens_p, V_p), inter_dtype),
                   jax.ShapeDtypeStruct((tokens_p, 1), jnp.float32)),
        grid_spec=pltpu.PrefetchScalarGridSpec(
            num_scalar_prefetch=0, grid=grid,
            in_specs=in_specs,
            out_specs=[pl.BlockSpec((tm, tv), lambda ti, vj: (ti, vj)),
                       pl.BlockSpec((tm, 1), lambda ti, vj: (ti, 0))],
            scratch_shapes=scratch),
        compiler_params=cparams,
    )(x2d, w_c, b2d)

    tm2, tv2 = plan["tm2"], plan["tv2"]
    out_p = pl.pallas_call(
        _subtract_lse_kernel,
        out_shape=jax.ShapeDtypeStruct((tokens_p, V_p), out_dtype),
        grid_spec=pltpu.PrefetchScalarGridSpec(
            num_scalar_prefetch=0,
            grid=(tokens_p // tm2, V_p // tv2),
            in_specs=[pl.BlockSpec((tm2, tv2), lambda ti, vj: (ti, vj)),
                      pl.BlockSpec((tm2, 1), lambda ti, vj: (ti, 0))],
            out_specs=pl.BlockSpec((tm2, tv2), lambda ti, vj: (ti, vj))),
        compiler_params=pltpu.CompilerParams(
            dimension_semantics=("parallel", "parallel"),
            vmem_limit_bytes=plan["vmem_limit"]),
        input_output_aliases={0: 0},   # logits buffer reused for the output
    )(logits, lse)

    return out_p[:tokens, :V].reshape(B, S, V)


def _reference(x, w, b):
    logits = jnp.einsum("bsh,hv->bsv", x.astype(jnp.float32),
                        w.astype(jnp.float32),
                        precision=jax.lax.Precision.HIGHEST) + b
    return jax.nn.log_softmax(logits, axis=-1)


if __name__ == "__main__":
    # Small shapes consistent with the module: hidden=32, vocab_size=384,
    # batch=2, seq=8.
    B, S, H, V = 2, 8, 32, 384

    key = jax.random.PRNGKey(0)
    kx, kw, kb = jax.random.split(key, 3)
    bound = 1.0 / (H ** 0.5)                       # mimic torch Linear init range
    w = jax.random.uniform(kw, (H, V), jnp.float32, -bound, bound)
    b = jax.random.uniform(kb, (V,), jnp.float32, -bound, bound)
    x = jax.random.normal(kx, (B, S, H), jnp.float32)

    ref = _reference(x, w, b)

    # 1) fused single-pass path, f32 operands (exact); tv=128 -> 3 vocab steps
    #    exercising the online-lse + resident-output slab.
    out = masked_language_model(x, w, b, tm=8, tv=128,
                                compute_dtype=jnp.float32)
    out = jax.block_until_ready(out)
    assert out.shape == (B, S, V)
    assert jnp.allclose(out, ref, atol=2e-4, rtol=2e-4), "fused f32 mismatch"

    # 2) forced two-pass fallback path, f32 operands.
    out2 = masked_language_model(x, w, b, tm=8, tv=128,
                                 compute_dtype=jnp.float32,
                                 force_two_pass=True)
    out2 = jax.block_until_ready(out2)
    assert out2.shape == (B, S, V)
    assert jnp.allclose(out2, ref, atol=2e-4, rtol=2e-4), "two-pass f32 mismatch"

    # 3) bf16-operand fast path (v6e/v7x), f32 accumulate, auto-planned tiles.
    out3 = masked_language_model(x, w, b, compute_dtype=jnp.bfloat16)
    out3 = jax.block_until_ready(out3)
    assert out3.shape == (B, S, V)
    assert jnp.allclose(out3, ref, atol=6e-2, rtol=6e-2), "bf16 mismatch"

    # 4) padded vocab (V not a multiple of 128) and padded token rows.
    V2, S2 = 200, 5
    x2, w2, b2 = x[:, :S2, :], w[:, :V2], b[:V2]
    ref2 = _reference(x2, w2, b2)
    out4 = masked_language_model(x2, w2, b2, tm=8, tv=128,
                                 compute_dtype=jnp.float32)
    out4 = jax.block_until_ready(out4)
    assert out4.shape == (B, S2, V2)
    assert jnp.allclose(out4, ref2, atol=2e-4, rtol=2e-4), "padded-V mismatch"

    print("KERNEL_OK")
</pallas_src>

<mosaic_0001>
module attributes {stable_mosaic.version = 11 : i64} {
  func.func @_fused_lm_head_kernel(%arg0: i32, %arg1: i32, %arg2: memref<8x32xf32, #tpu.memory_space<vmem>>, %arg3: memref<32x128xf32, #tpu.memory_space<vmem>>, %arg4: memref<1x128xf32, #tpu.memory_space<vmem>>, %arg5: memref<8x384xf32, #tpu.memory_space<vmem>>, %arg6: memref<8x1xf32, #tpu.memory_space<vmem>>, %arg7: memref<8x1xf32, #tpu.memory_space<vmem>>) attributes {dimension_semantics = [#tpu.dimension_semantics<parallel>, #tpu.dimension_semantics<arbitrary>], iteration_bounds = array<i64: 2, 3>, scalar_prefetch = 0 : i64, scratch_operands = 2 : i64, tpu.core_type = #tpu.core_type<tc>, window_params = [{transform_indices = @transform_0, window_bounds = array<i64: 8, 32>}, {transform_indices = @transform_1, window_bounds = array<i64: 32, 128>}, {transform_indices = @transform_2, window_bounds = array<i64: 1, 128>}, {transform_indices = @transform_3, window_bounds = array<i64: 8, 384>}]} {
    %c0_i32 = arith.constant 0 : i32
    %0 = arith.cmpi eq, %arg1, %c0_i32 : i32
    %1 = arith.extui %0 : i1 to i32
    %c0_i32_0 = arith.constant 0 : i32
    %2 = arith.cmpi ne, %1, %c0_i32_0 : i32
    scf.if %2 {
      %cst_22 = arith.constant 0xFF800000 : f32
      %37 = vector.broadcast %cst_22 : f32 to vector<8x1xf32>
      %c0_23 = arith.constant 0 : index
      %c0_24 = arith.constant 0 : index
      %38 = vector.load %arg6[%c0_23, %c0_24] : memref<8x1xf32, #tpu.memory_space<vmem>>, vector<8x1xf32>
      tpu.vector_store %arg6[%c0_23, %c0_24], %37 {strides = array<i32>} : memref<8x1xf32, #tpu.memory_space<vmem>>, vector<8x1xf32>,
      %cst_25 = arith.constant 0.000000e+00 : f32
      %39 = vector.broadcast %cst_25 : f32 to vector<8x1xf32>
      %c0_26 = arith.constant 0 : index
      %c0_27 = arith.constant 0 : index
      %40 = vector.load %arg7[%c0_26, %c0_27] : memref<8x1xf32, #tpu.memory_space<vmem>>, vector<8x1xf32>
      tpu.vector_store %arg7[%c0_26, %c0_27], %39 {strides = array<i32>} : memref<8x1xf32, #tpu.memory_space<vmem>>, vector<8x1xf32>,
    } else {
    }
    %c0 = arith.constant 0 : index
    %c0_1 = arith.constant 0 : index
    %3 = vector.load %arg2[%c0, %c0_1] : memref<8x32xf32, #tpu.memory_space<vmem>>, vector<8x32xf32>
    %c0_2 = arith.constant 0 : index
    %c0_3 = arith.constant 0 : index
    %4 = vector.load %arg3[%c0_2, %c0_3] : memref<32x128xf32, #tpu.memory_space<vmem>>, vector<32x128xf32>
    %cst = arith.constant dense<0.000000e+00> : vector<8x128xf32>
    %5 = tpu.matmul %3, %4, %cst {dimension_numbers = #tpu.dot_dimension_numbers<[1], [0], [0], [1], [0, 0, 1, 1], [], []>} : vector<8x32xf32>, vector<32x128xf32>, vector<8x128xf32> -> vector<8x128xf32>
    %c0_4 = arith.constant 0 : index
    %c0_5 = arith.constant 0 : index
    %6 = vector.load %arg4[%c0_4, %c0_5] : memref<1x128xf32, #tpu.memory_space<vmem>>, vector<1x128xf32>
    %7 = vector.broadcast %6 : vector<1x128xf32> to vector<8x128xf32>
    %8 = arith.addf %5, %7 : vector<8x128xf32>
    %c0_i32_6 = arith.constant 0 : i32
    %9 = arith.cmpi eq, %arg1, %c0_i32_6 : i32
    %10 = arith.extui %9 : i1 to i32
    %c0_i32_7 = arith.constant 0 : i32
    %11 = arith.cmpi ne, %10, %c0_i32_7 : i32
    scf.if %11 {
      %c0_22 = arith.constant 0 : index
      %c0_23 = arith.constant 0 : index
      %37 = vector.load %arg5[%c0_22, %c0_23] : memref<8x384xf32, #tpu.memory_space<vmem>>, vector<8x128xf32>
      tpu.vector_store %arg5[%c0_22, %c0_23], %8 {strides = array<i32>} : memref<8x384xf32, #tpu.memory_space<vmem>>, vector<8x128xf32>,
    } else {
    }
    %c1_i32 = arith.constant 1 : i32
    %12 = arith.cmpi eq, %arg1, %c1_i32 : i32
    %13 = arith.extui %12 : i1 to i32
    %c0_i32_8 = arith.constant 0 : i32
    %14 = arith.cmpi ne, %13, %c0_i32_8 : i32
    scf.if %14 {
      %c0_22 = arith.constant 0 : index
      %c128 = arith.constant 128 : index
      %37 = vector.load %arg5[%c0_22, %c128] : memref<8x384xf32, #tpu.memory_space<vmem>>, vector<8x128xf32>
      tpu.vector_store %arg5[%c0_22, %c128], %8 {strides = array<i32>} : memref<8x384xf32, #tpu.memory_space<vmem>>, vector<8x128xf32>,
    } else {
    }
    %c2_i32 = arith.constant 2 : i32
    %15 = arith.cmpi eq, %arg1, %c2_i32 : i32
    %16 = arith.extui %15 : i1 to i32
    %c0_i32_9 = arith.constant 0 : i32
    %17 = arith.cmpi ne, %16, %c0_i32_9 : i32
    scf.if %17 {
      %c0_22 = arith.constant 0 : index
      %c256 = arith.constant 256 : index
      %37 = vector.load %arg5[%c0_22, %c256] : memref<8x384xf32, #tpu.memory_space<vmem>>, vector<8x128xf32>
      tpu.vector_store %arg5[%c0_22, %c256], %8 {strides = array<i32>} : memref<8x384xf32, #tpu.memory_space<vmem>>, vector<8x128xf32>,
    } else {
    }
    %c0_10 = arith.constant 0 : index
    %c0_11 = arith.constant 0 : index
    %18 = vector.load %arg6[%c0_10, %c0_11] : memref<8x1xf32, #tpu.memory_space<vmem>>, vector<8x1xf32>
    %cst_12 = arith.constant dense<0xFF800000> : vector<8xf32>
    %19 = vector.multi_reduction <maximumf>, %8, %cst_12 [1] : vector<8x128xf32> to vector<8xf32>
    %20 = vector.shape_cast %19 : vector<8xf32> to vector<8x1xf32>
    %21 = arith.maximumf %18, %20 : vector<8x1xf32>
    %c0_13 = arith.constant 0 : index
    %c0_14 = arith.constant 0 : index
    %22 = vector.load %arg7[%c0_13, %c0_14] : memref<8x1xf32, #tpu.memory_space<vmem>>, vector<8x1xf32>
    %23 = arith.subf %18, %21 : vector<8x1xf32>
    %24 = math.exp %23 : vector<8x1xf32>
    %25 = arith.mulf %22, %24 : vector<8x1xf32>
    %26 = vector.broadcast %21 : vector<8x1xf32> to vector<8x128xf32>
    %27 = arith.subf %8, %26 : vector<8x128xf32>
    %28 = math.exp %27 : vector<8x128xf32>
    %cst_15 = arith.constant dense<0.000000e+00> : vector<8xf32>
    %29 = vector.multi_reduction <add>, %28, %cst_15 [1] : vector<8x128xf32> to vector<8xf32>
    %30 = vector.shape_cast %29 : vector<8xf32> to vector<8x1xf32>
    %31 = arith.addf %25, %30 : vector<8x1xf32>
    %c0_16 = arith.constant 0 : index
    %c0_17 = arith.constant 0 : index
    %32 = vector.load %arg7[%c0_16, %c0_17] : memref<8x1xf32, #tpu.memory_space<vmem>>, vector<8x1xf32>
    tpu.vector_store %arg7[%c0_16, %c0_17], %31 {strides = array<i32>} : memref<8x1xf32, #tpu.memory_space<vmem>>, vector<8x1xf32>,
    %c0_18 = arith.constant 0 : index
    %c0_19 = arith.constant 0 : index
    %33 = vector.load %arg6[%c0_18, %c0_19] : memref<8x1xf32, #tpu.memory_space<vmem>>, vector<8x1xf32>
    tpu.vector_store %arg6[%c0_18, %c0_19], %21 {strides = array<i32>} : memref<8x1xf32, #tpu.memory_space<vmem>>, vector<8x1xf32>,
    %c2_i32_20 = arith.constant 2 : i32
    %34 = arith.cmpi eq, %arg1, %c2_i32_20 : i32
    %35 = arith.extui %34 : i1 to i32
    %c0_i32_21 = arith.constant 0 : i32
    %36 = arith.cmpi ne, %35, %c0_i32_21 : i32
    scf.if %36 {
      %c0_22 = arith.constant 0 : index
      %c0_23 = arith.constant 0 : index
      %37 = vector.load %arg6[%c0_22, %c0_23] : memref<8x1xf32, #tpu.memory_space<vmem>>, vector<8x1xf32>
      %c0_24 = arith.constant 0 : index
      %c0_25 = arith.constant 0 : index
      %38 = vector.load %arg7[%c0_24, %c0_25] : memref<8x1xf32, #tpu.memory_space<vmem>>, vector<8x1xf32>
      %39 = math.log %38 : vector<8x1xf32>
      %40 = arith.addf %37, %39 : vector<8x1xf32>
      %c0_26 = arith.constant 0 : index
      %c0_27 = arith.constant 0 : index
      %41 = vector.load %arg5[%c0_26, %c0_27] : memref<8x384xf32, #tpu.memory_space<vmem>>, vector<8x384xf32>
      %42 = vector.broadcast %40 : vector<8x1xf32> to vector<8x384xf32>
      %43 = arith.subf %41, %42 : vector<8x384xf32>
      %c0_28 = arith.constant 0 : index
      %c0_29 = arith.constant 0 : index
      %44 = vector.load %arg5[%c0_28, %c0_29] : memref<8x384xf32, #tpu.memory_space<vmem>>, vector<8x384xf32>
      tpu.vector_store %arg5[%c0_28, %c0_29], %43 {strides = array<i32>} : memref<8x384xf32, #tpu.memory_space<vmem>>, vector<8x384xf32>,
    } else {
    }
    return
  }
  func.func @transform_0(%arg0: i32, %arg1: i32) -> (i32, i32) {
    %c0_i32 = arith.constant 0 : i32
    %c0_i32_0 = arith.constant 0 : i32
    return %arg0, %c0_i32 : i32, i32
  }
  func.func @transform_1(%arg0: i32, %arg1: i32) -> (i32, i32) {
    %c0_i32 = arith.constant 0 : i32
    %c0_i32_0 = arith.constant 0 : i32
    return %c0_i32, %arg1 : i32, i32
  }
  func.func @transform_2(%arg0: i32, %arg1: i32) -> (i32, i32) {
    %c0_i32 = arith.constant 0 : i32
    %c0_i32_0 = arith.constant 0 : i32
    return %c0_i32, %arg1 : i32, i32
  }
  func.func @transform_3(%arg0: i32, %arg1: i32) -> (i32, i32) {
    %c0_i32 = arith.constant 0 : i32
    %c0_i32_0 = arith.constant 0 : i32
    return %arg0, %c0_i32 : i32, i32
  }
}

</mosaic_0001>

<llo_original>
// kernel: tpu_custom_call.1
$region0: #{tpu_custom_call.1}
  #allocation0 [shape = 'u32[]', space=smem, size = 0x4, offset = 0x4, fixed_abs, tag = 'smem constant byte address 0x4 - core index']
  #allocation1 [shape = 'u32[144,128]{1,0:T(1,128)}', space=vmem, size = 0x12000, scoped, tag = 'internal scratch']
  #allocation2 [shape = 'f32[8,1]{1,0:T(8,128)}', space=vmem, size = 0x1000, scoped, tag = 'scratch operand']
  #allocation3 [shape = 'f32[8,1]{1,0:T(8,128)}', space=vmem, size = 0x1000, scoped, tag = 'scratch operand']
  %s0 = inlined_call_operand.hbm [shape: f32[16,32], index: 0, kind: input, shape index: {}]
  %s1 = inlined_call_operand.hbm [shape: f32[32,384], index: 1, kind: input, shape index: {}]
  %s2 = inlined_call_operand.vmem [shape: f32[1,384], index: 2, kind: input, shape index: {}]
  %s3 = inlined_call_operand.hbm [shape: f32[16,384], index: 3, kind: output, shape index: {}]
  %s4 = sld [smem:[#allocation0]]
  $region73: #{tpu_custom_call.1} parent=0
    _
  %s6 = ssub.s32 1, %s4
  %s7 = scalar_select 0, %s6, %s4
  $region1: #{tpu_custom_call.1} parent=0
    #allocation4 [shape = 'u8[8192]{0}', space=vmem, size = 0x2000, scoped, tag = 'input window, operand 0']
    #allocation5 [shape = 's32[2]{0}', space=sflag, size = 0x8, scoped, tag = 'scoped memory for tpu_custom_call.1']
    #allocation6 [shape = 's32[2]{0}', space=sflag, size = 0x8, scoped, tag = 'scoped memory for tpu_custom_call.1']
    #allocation7 [shape = 'u8[32768]{0}', space=vmem, size = 0x8000, scoped, tag = 'input window, operand 1']
    #allocation8 [shape = 's32[2]{0}', space=sflag, size = 0x8, scoped, tag = 'scoped memory for tpu_custom_call.1']
    #allocation9 [shape = 'u8[24576]{0}', space=vmem, size = 0x6000, scoped, tag = 'output window, operand 0']
    %8 = vsyncpa [#allocation5], 0
    %s9 = scalar_lea.sflag [#allocation5], 1
    %10 = vsyncpa %s9, 0
    %11 = vsyncpa [#allocation8], 0
    %s12 = scalar_lea.sflag [#allocation8], 1
    %13 = vsyncpa %s12, 0
    %14 = vsyncpa [#allocation6], 0
    %s15 = scalar_lea.sflag [#allocation6], 1
    %16 = vsyncpa %s15, 0
    loop: start=0, step=1, limit=8
    $region2: #{tpu_custom_call.1} parent=1 // loop_pre_header
      _
    $region3: #{tpu_custom_call.1} parent=1 // loop_header
      %s18 = sphi 0, %s22
      %p19 = scmp.ge.s32.totalorder %s18, 8
      %s25 = sphi 0, %s37
      %s26 = sphi 0, %s33
      %s27 = sphi 0, %s25
      %s28 = sphi 0, %s26
      %s29 = sphi 0, %s27
      %s30 = sphi 0, %s28
      %s40 = sphi 0, %s42
      %s43 = sphi 0, %s40
      %s44 = sphi 0, %s43
      %s60 = sphi 0, %s44
      %s66 = sphi 0, %s68
      %s69 = sphi 0, %s66
      %s70 = sphi 0, %s69
      %s86 = sphi 0, %s70
      %s92 = sphi 0, %s94
      %s95 = sphi 0, %s92
      %s96 = sphi 0, %s95
      %s112 = sphi 0, %s96
      %s118 = sphi 0, %s120
      %s121 = sphi 0, %s118
      %s122 = sphi 0, %s121
      %s138 = sphi 0, %s122
    $region4: #{tpu_custom_call.1} parent=1 // loop_header_branch
      %21 = sbr.rel (%p19) target = $region8
    $region5: #{tpu_custom_call.1} parent=1 // loop_body
      %s23 = ssub.s32 %s18, 1
      %s24 = ssub.s32 %s18, 2
      %s31 = sadd.s32 1, %s26
      %p32 = scmp.ge.s32.totalorder %s31, 3
      %s33 = scalar_select %p32, 0, %s31
      %s34 = sadd.s32 1, %s25
      %s35 = scalar_select %p32, %s34, %s25
      %p36 = scmp.ge.s32.totalorder %s35, 2
      %s37 = scalar_select %p36, 0, %s35
      %s38 = ssub.s32 %s25, %s37
      %p39 = scmp.eq.s32.totalorder %s38, 0
      %s41 = sadd.s32 %s40, 1
      %s42 = scalar_select %p39, %s40, %s41
      %p45 = pneg %p39
      %p46 = scmp.eq.s32.totalorder %s18, 5
      %p47 = por %p45, %p46
      %p48 = scmp.ne.s32.totalorder %s40, %s43
      %p49 = scmp.eq.s32.totalorder %s18, 0
      %p50 = por %p48, %p49
      %p51 = scmp.ne.s32.totalorder %s40, %s43
      %p52 = scmp.eq.s32.totalorder %s23, 5
      %p53 = por %p51, %p52
      %p54 = scmp.ne.s32.totalorder %s43, %s44
      %p55 = scmp.eq.s32.totalorder %s23, 0
      %p56 = por %p54, %p55
      %p57 = scmp.ne.s32.totalorder %s43, %s44
      %p58 = scmp.eq.s32.totalorder %s24, 5
      %p59 = por %p57, %p58
      %p61 = scmp.ne.s32.totalorder %s44, %s60
      %p62 = scmp.eq.s32.totalorder %s24, 0
      %p63 = por %p61, %p62
      %s64 = ssub.s32 %s26, %s33
      %p65 = scmp.eq.s32.totalorder %s64, 0
      %s67 = sadd.s32 %s66, 1
      %s68 = scalar_select %p65, %s66, %s67
      %p71 = pneg %p65
      %p72 = scmp.eq.s32.totalorder %s18, 5
      %p73 = por %p71, %p72
      %p74 = scmp.ne.s32.totalorder %s66, %s69
      %p75 = scmp.eq.s32.totalorder %s18, 0
      %p76 = por %p74, %p75
      %p77 = scmp.ne.s32.totalorder %s66, %s69
      %p78 = scmp.eq.s32.totalorder %s23, 5
      %p79 = por %p77, %p78
      %p80 = scmp.ne.s32.totalorder %s69, %s70
      %p81 = scmp.eq.s32.totalorder %s23, 0
      %p82 = por %p80, %p81
      %p83 = scmp.ne.s32.totalorder %s69, %s70
      %p84 = scmp.eq.s32.totalorder %s24, 5
      %p85 = por %p83, %p84
      %p87 = scmp.ne.s32.totalorder %s70, %s86
      %p88 = scmp.eq.s32.totalorder %s24, 0
      %p89 = por %p87, %p88
      %s90 = ssub.s32 %s26, %s33
      %p91 = scmp.eq.s32.totalorder %s90, 0
      %s93 = sadd.s32 %s92, 1
      %s94 = scalar_select %p91, %s92, %s93
      %p97 = pneg %p91
      %p98 = scmp.eq.s32.totalorder %s18, 5
      %p99 = por %p97, %p98
      %p100 = scmp.ne.s32.totalorder %s92, %s95
      %p101 = scmp.eq.s32.totalorder %s18, 0
      %p102 = por %p100, %p101
      %p103 = scmp.ne.s32.totalorder %s92, %s95
      %p104 = scmp.eq.s32.totalorder %s23, 5
      %p105 = por %p103, %p104
      %p106 = scmp.ne.s32.totalorder %s95, %s96
      %p107 = scmp.eq.s32.totalorder %s23, 0
      %p108 = por %p106, %p107
      %p109 = scmp.ne.s32.totalorder %s95, %s96
      %p110 = scmp.eq.s32.totalorder %s24, 5
      %p111 = por %p109, %p110
      %p113 = scmp.ne.s32.totalorder %s96, %s112
      %p114 = scmp.eq.s32.totalorder %s24, 0
      %p115 = por %p113, %p114
      %s116 = ssub.s32 %s25, %s37
      %p117 = scmp.eq.s32.totalorder %s116, 0
      %s119 = sadd.s32 %s118, 1
      %s120 = scalar_select %p117, %s118, %s119
      %p123 = pneg %p117
      %p124 = scmp.eq.s32.totalorder %s18, 5
      %p125 = por %p123, %p124
      %p126 = scmp.ne.s32.totalorder %s118, %s121
      %p127 = scmp.eq.s32.totalorder %s18, 0
      %p128 = por %p126, %p127
      %p129 = scmp.ne.s32.totalorder %s118, %s121
      %p130 = scmp.eq.s32.totalorder %s23, 5
      %p131 = por %p129, %p130
      %p132 = scmp.ne.s32.totalorder %s121, %s122
      %p133 = scmp.eq.s32.totalorder %s23, 0
      %p134 = por %p132, %p133
      %p135 = scmp.ne.s32.totalorder %s121, %s122
      %p136 = scmp.eq.s32.totalorder %s24, 5
      %p137 = por %p135, %p136
      %p139 = scmp.ne.s32.totalorder %s122, %s138
      %p140 = scmp.eq.s32.totalorder %s24, 0
      %p141 = por %p139, %p140
      %p142 = scmp.le.s32.totalorder 1, %s18
      %p143 = scmp.lt.s32.totalorder %s18, 7
      %p144 = pnand %p142, %p143
      %p145 = pneg %p144
      // Predicated region
      $region9: #{tpu_custom_call.1} parent=5 // pred_check
        _
      $region10: #{tpu_custom_call.1} parent=5 // pred_check_branch
        %147 = sbr.rel (%p144) target = $region12
      $region11: #{tpu_custom_call.1} parent=5 // pred_region
        %s148 = ssub.s32 %s18, 1
      $region12: #{tpu_custom_call.1} parent=5 // pred_fallthru
        _
      %p149 = scmp.lt.s32.totalorder %s18, 6
      // Predicated region
      $region13: #{tpu_custom_call.1} parent=5 // pred_check
        %p150 = pneg %p149
      $region14: #{tpu_custom_call.1} parent=5 // pred_check_branch
        %152 = sbr.rel (%p150) target = $region16
      $region15: #{tpu_custom_call.1} parent=5 // pred_region
        // Predicated region
        $region17: #{tpu_custom_call.1} parent=15 // pred_check
          %p153 = pneg %p50
        $region18: #{tpu_custom_call.1} parent=15 // pred_check_branch
          %155 = sbr.rel (%p153) target = $region20
        $region19: #{tpu_custom_call.1} parent=15 // pred_region
          %s156 = sand.u32 %s40, 1
          %s157 = scalar_lea.sflag [#allocation5], %s156
          %s158 = sand.u32 %s40, 1
          %s159 = smul.addr %s158, 8
          %s160 = scalar_lea.vmem [#allocation4], %s159
          %s162 = ssub.s32 128, 128
          %163 = vsyncadd %s157, %s162
          %s164 = smul.addr %s25, 128
          %s165 = scalar_lea.hbm %s0, %s164
          %s167 = sshll.u32 %s160, 4
          %s168 = int_to_ptr.vmem [resolvable:$true] %s167
          %170 = dma.hbm_to_vmem [thread:$0]  %s165, 128, %s168, %s157
        $region20: #{tpu_custom_call.1} parent=15 // pred_fallthru
          _
        // Predicated region
        $region21: #{tpu_custom_call.1} parent=15 // pred_check
          %p171 = pneg %p76
        $region22: #{tpu_custom_call.1} parent=15 // pred_check_branch
          %173 = sbr.rel (%p171) target = $region24
        $region23: #{tpu_custom_call.1} parent=15 // pred_region
          %s174 = sand.u32 %s66, 1
          %s175 = scalar_lea.sflag [#allocation8], %s174
          %s176 = sand.u32 %s66, 1
          %s177 = smul.addr %s176, 32
          %s178 = scalar_lea.vmem [#allocation7], %s177
          %s180 = ssub.s32 512, 512
          %181 = vsyncadd %s175, %s180
          %s182 = smul.addr %s26, 128
          %s183 = scalar_lea.hbm %s1, %s182
          %s184 = sshll.u32 %s178, 4
          %s185 = int_to_ptr.vmem [resolvable:$true] %s184
          %190 = dma.hbm_to_vmem [thread:$0]  %s183, 512, %s185, %s175, 384, 128, 8
        $region24: #{tpu_custom_call.1} parent=15 // pred_fallthru
          _
        // Predicated region
        $region25: #{tpu_custom_call.1} parent=15 // pred_check
          %p191 = pneg %p102
        $region26: #{tpu_custom_call.1} parent=15 // pred_check_branch
          %193 = sbr.rel (%p191) target = $region28
        $region27: #{tpu_custom_call.1} parent=15 // pred_region
          %p194 = scmp.lt.s32.totalorder %s26, 2
          %s195 = scalar_select %p194, %s26, 2
          %s196 = scalar_lea.vmem %s2, %s195
        $region28: #{tpu_custom_call.1} parent=15 // pred_fallthru
          _
      $region16: #{tpu_custom_call.1} parent=5 // pred_fallthru
        _
      %p197 = scmp.le.s32.totalorder 1, %s18
      %p198 = scmp.lt.s32.totalorder %s18, 7
      %p199 = pnand %p197, %p198
      %p200 = pneg %p199
      // Predicated region
      $region29: #{tpu_custom_call.1} parent=5 // pred_check
        _
      $region30: #{tpu_custom_call.1} parent=5 // pred_check_branch
        %202 = sbr.rel (%p199) target = $region32
      $region31: #{tpu_custom_call.1} parent=5 // pred_region
        %s203 = ssub.s32 %s18, 1
        %s204 = sand.u32 %s43, 1
        %s205 = scalar_lea.sflag [#allocation5], %s204
        %s206 = sand.u32 %s43, 1
        %s207 = smul.addr %s206, 8
        %s208 = scalar_lea.vmem [#allocation4], %s207
        // Predicated region
        $region33: #{tpu_custom_call.1} parent=31 // pred_check
          %p209 = pneg %p56
        $region34: #{tpu_custom_call.1} parent=31 // pred_check_branch
          %211 = sbr.rel (%p209) target = $region36
        $region35: #{tpu_custom_call.1} parent=31 // pred_region
          %212 = dma.done %s205, 128
        $region36: #{tpu_custom_call.1} parent=31 // pred_fallthru
          _
        %s213 = sand.u32 %s69, 1
        %s214 = scalar_lea.sflag [#allocation8], %s213
        %s215 = sand.u32 %s69, 1
        %s216 = smul.addr %s215, 32
        %s217 = scalar_lea.vmem [#allocation7], %s216
        // Predicated region
        $region37: #{tpu_custom_call.1} parent=31 // pred_check
          %p218 = pneg %p82
        $region38: #{tpu_custom_call.1} parent=31 // pred_check_branch
          %220 = sbr.rel (%p218) target = $region40
        $region39: #{tpu_custom_call.1} parent=31 // pred_region
          %221 = dma.done %s214, 512
        $region40: #{tpu_custom_call.1} parent=31 // pred_fallthru
          _
        %s222 = sand.u32 %s43, 1
        %s223 = scalar_lea.sflag [#allocation5], %s222
        %s224 = sand.u32 %s43, 1
        %s225 = smul.addr %s224, 8
        %s226 = scalar_lea.vmem [#allocation4], %s225
        %p227 = pneg %p56
        %p228 = pneg %p53
        %s229 = sand.u32 %s69, 1
        %s230 = scalar_lea.sflag [#allocation8], %s229
        %s231 = sand.u32 %s69, 1
        %s232 = smul.addr %s231, 32
        %s233 = scalar_lea.vmem [#allocation7], %s232
        %p234 = pneg %p82
        %p235 = pneg %p79
        %p236 = scmp.lt.s32.totalorder %s28, 2
        %s237 = scalar_select %p236, %s28, 2
        %s238 = scalar_lea.vmem %s2, %s237
        %p239 = pneg %p108
        %p240 = pneg %p105
        %p241 = pneg %p134
        %p242 = pneg %p131
        %s243 = sand.u32 %s121, 1
        %s244 = scalar_lea.sflag [#allocation6], %s243
        %s245 = sand.u32 %s121, 1
        %s246 = smul.addr %s245, 24
        %s247 = scalar_lea.vmem [#allocation9], %s246
        %p248 = scmp.lt.s32.totalorder %s28, 2
        %s249 = scalar_select %p248, %s28, 2
        %s250 = scalar_lea.vmem %s2, %s249
        %p251 = scmp.eq.s32.totalorder %s28, 0
        // Predicated region
        $region41: #{tpu_custom_call.1} parent=31 // pred_check
          %p252 = pneg %p251
        $region42: #{tpu_custom_call.1} parent=31 // pred_check_branch
          %254 = sbr.rel (%p252) target = $region44
        $region43: #{tpu_custom_call.1} parent=31 // pred_region
          %vm255 = vcmask 7168
          %256 = vst.msk [vmem:[#allocation2] sm:$0xff] %vm255, -inf
          %257 = vst.msk [vmem:[#allocation3] sm:$0xff] %vm255, 0.0
        $region44: #{tpu_custom_call.1} parent=31 // pred_fallthru
          _
        %v258 = vld [vmem:[%s208] sm:$0xff]
        %v259 = vld [vmem:[%s217] sm:$0xff]
        %v260 = vld [vmem:[%s217 + $0x8] sm:$0xff]
        %v261 = vld [vmem:[%s217 + $0x10] sm:$0xff]
        %v262 = vld [vmem:[%s217 + $0x18] sm:$0xff]
        %v263 = vld [vmem:[%s250] sm:$0x1]
        %v265 = vlaneseq
        %v266 = vshrl.u32 %v265, 7
        %v267 = vsub.s32 0, %v266
        %v268 = vrot.slane %v263, %v267
        %vm270 = vcmask 261120
        %v272 = vsel %vm270, %v258, 0
        %274 = vmatprep.subr.mxu0 0.0
        %275 = vmatpush1.msra.mxu0 %v259
        %276 = vmatprep.subr.mxu0 0.0
        %277 = vmatpush1.msra.mxu0 %v260
        %278 = vmatprep.subr.mxu0 0.0
        %279 = vmatpush1.msra.mxu0 %v261
        %280 = vmatprep.subr.mxu0 0.0
        %281 = vmatpush1.msra.mxu0 %v262
        %282 = vmatprep.subr.mxu0 0.0
        %283 = vmatpush1.msra.mxu0 0.0
        %284 = vmatprep.subr.mxu0 0.0
        %285 = vmatpush1.msra.mxu0 0.0
        %286 = vmatprep.subr.mxu0 0.0
        %287 = vmatpush1.msra.mxu0 0.0
        %288 = vmatprep.subr.mxu0 0.0
        %289 = vmatpush1.msra.mxu0 0.0
        %290 = vmatprep.subr.mxu0 0.0
        %291 = vmatpush1.msra.mxu0 0.0
        %292 = vmatprep.subr.mxu0 0.0
        %293 = vmatpush1.msra.mxu0 0.0
        %294 = vmatprep.subr.mxu0 0.0
        %295 = vmatpush1.msra.mxu0 0.0
        %296 = vmatprep.subr.mxu0 0.0
        %297 = vmatpush1.msra.mxu0 0.0
        %298 = vmatprep.subr.mxu0 0.0
        %299 = vmatpush1.msra.mxu0 0.0
        %300 = vmatprep.subr.mxu0 0.0
        %301 = vmatpush1.msra.mxu0 0.0
        %302 = vmatprep.subr.mxu0 0.0
        %303 = vmatpush1.msra.mxu0 0.0
        %304 = vmatprep.subr.mxu0 0.0
        %305 = vmatpush1.msra.mxu0 0.0
        %306 = vmatprep.subr.mxu0 0.0
        %307 = vmatpush1.msra.mxu0 0.0
        %308 = vmatprep.subr.mxu0 0.0
        %309 = vmatpush1.msra.mxu0 0.0
        %310 = vmatprep.subr.mxu0 0.0
        %311 = vmatpush1.msra.mxu0 0.0
        %312 = vmatprep.subr.mxu0 0.0
        %313 = vmatpush1.msra.mxu0 0.0
        %314 = vmatprep.subr.mxu0 0.0
        %315 = vmatpush1.msra.mxu0 0.0
        %316 = vmatprep.subr.mxu0 0.0
        %317 = vmatpush1.msra.mxu0 0.0
        %318 = vmatprep.subr.mxu0 0.0
        %319 = vmatpush1.msra.mxu0 0.0
        %320 = vmatprep.subr.mxu0 0.0
        %321 = vmatpush1.msra.mxu0 0.0
        %322 = vmatprep.subr.mxu0 0.0
        %323 = vmatpush1.msra.mxu0 0.0
        %324 = vmatprep.subr.mxu0 0.0
        %325 = vmatpush1.msra.mxu0 0.0
        %326 = vmatprep.subr.mxu0 0.0
        %327 = vmatpush1.msra.mxu0 0.0
        %328 = vmatprep.subr.mxu0 0.0
        %329 = vmatpush1.msra.mxu0 0.0
        %330 = vmatprep.subr.mxu0 0.0
        %331 = vmatpush1.msra.mxu0 0.0
        %332 = vmatprep.subr.mxu0 0.0
        %333 = vmatpush1.msra.mxu0 0.0
        %334 = vmatprep.subr.mxu0 0.0
        %335 = vmatpush1.msra.mxu0 0.0
        %336 = vmatprep.subr.mxu0 0.0
        %337 = vmatpush1.msra.mxu0 0.0
        %338 = vmatprep.mubr.f32.mxu0 0.0
        %339 = vmatmul.mubr.f32.gmra.mrb[0].mxu0 %v272
        %v340 = vpop.f32.mrb[0].mxu0
        %v341 = vadd.f32 %v268, %v340
        %v342 = vpop.f32.mrb[0].mxu0
        %343 = vdwg.mxu0
        // Predicated region
        $region45: #{tpu_custom_call.1} parent=31 // pred_check
          %p344 = pneg %p251
        $region46: #{tpu_custom_call.1} parent=31 // pred_check_branch
          %346 = sbr.rel (%p344) target = $region48
        $region47: #{tpu_custom_call.1} parent=31 // pred_region
          %347 = vst [vmem:[%s247] sm:$0xff] %v341
        $region48: #{tpu_custom_call.1} parent=31 // pred_fallthru
          _
        %p348 = scmp.eq.s32.totalorder %s28, 1
        // Predicated region
        $region49: #{tpu_custom_call.1} parent=31 // pred_check
          %p349 = pneg %p348
        $region50: #{tpu_custom_call.1} parent=31 // pred_check_branch
          %351 = sbr.rel (%p349) target = $region52
        $region51: #{tpu_custom_call.1} parent=31 // pred_region
          %352 = vst [vmem:[%s247 + $0x8] sm:$0xff] %v341
        $region52: #{tpu_custom_call.1} parent=31 // pred_fallthru
          _
        %p353 = scmp.eq.s32.totalorder %s28, 2
        // Predicated region
        $region53: #{tpu_custom_call.1} parent=31 // pred_check
          %p354 = pneg %p353
        $region54: #{tpu_custom_call.1} parent=31 // pred_check_branch
          %356 = sbr.rel (%p354) target = $region56
        $region55: #{tpu_custom_call.1} parent=31 // pred_region
          %357 = vst [vmem:[%s247 + $0x10] sm:$0xff] %v341
        $region56: #{tpu_custom_call.1} parent=31 // pred_fallthru
          _
        %v358 = vld [vmem:[#allocation2] sm:$0xff]
        %359 = vmax.xlane.f32.xlu0 %v341
        %v360 = vpop.xlane.xlu0 %359
        %v361 = vmax.f32 %v358, %v360
        %v362 = vld [vmem:[#allocation3] sm:$0xff]
        %v363 = vsub.f32 %v358, %v361
        %v364 = vmul.f32 %v363, 1.442695
        %v365 = vpow.pop %v364
        %v366 = vmul.f32 %v362, %v365
        %368 = vset.pattern.permute.xlu0 0
        %369 = vperm.xlu0 %368, %v361
        %v370 = vpop.permute.xlu0 %369
        %v372 = vsub.f32 %v341, %v370
        %v373 = vmul.f32 %v372, 1.442695
        %v374 = vpow.pop %v373
        %375 = vadd.xlane.f32.xlu0 %v374
        %v376 = vpop.xlane.xlu0 %375
        %v377 = vadd.f32 %v366, %v376
        %vm378 = vcmask 7168
        %379 = vst.msk [vmem:[#allocation3] sm:$0xff] %vm378, %v377
        %380 = vst.msk [vmem:[#allocation2] sm:$0xff] %vm378, %v361
        // Predicated region
        $region57: #{tpu_custom_call.1} parent=31 // pred_check
          %p381 = pneg %p353
        $region58: #{tpu_custom_call.1} parent=31 // pred_check_branch
          %383 = sbr.rel (%p381) target = $region60
        $region59: #{tpu_custom_call.1} parent=31 // pred_region
          %v384 = vld [vmem:[#allocation2] sm:$0xff]
          %v385 = vld [vmem:[#allocation3] sm:$0xff]
          %v386 = vlog2.pop %v385
          %v387 = vmul.f32 %v386, 0.6931472
          %v388 = vadd.f32 %v384, %v387
          %v389 = vld [vmem:[%s247] sm:$0xff]
          %v390 = vld [vmem:[%s247 + $0x8] sm:$0xff]
          %v391 = vld [vmem:[%s247 + $0x10] sm:$0xff]
          %393 = vset.pattern.permute.xlu0 0
          %394 = vperm.xlu0 %393, %v388
          %v395 = vpop.permute.xlu0 %394
          %v397 = vsub.f32 %v389, %v395
          %v398 = vsub.f32 %v390, %v395
          %v399 = vsub.f32 %v391, %v395
          %400 = vst [vmem:[%s247] sm:$0xff] %v397
          %401 = vst [vmem:[%s247 + $0x8] sm:$0xff] %v398
          %402 = vst [vmem:[%s247 + $0x10] sm:$0xff] %v399
        $region60: #{tpu_custom_call.1} parent=31 // pred_fallthru
          _
        %s403 = sand.u32 %s121, 1
        %s404 = scalar_lea.sflag [#allocation6], %s403
        %s405 = sand.u32 %s121, 1
        %s406 = smul.addr %s405, 24
        %s407 = scalar_lea.vmem [#allocation9], %s406
        // Predicated region
        $region61: #{tpu_custom_call.1} parent=31 // pred_check
          %p408 = pneg %p131
        $region62: #{tpu_custom_call.1} parent=31 // pred_check_branch
          %410 = sbr.rel (%p408) target = $region64
        $region63: #{tpu_custom_call.1} parent=31 // pred_region
          %s412 = ssub.s32 384, 384
          %413 = vsyncadd %s404, %s412
          %s414 = smul.addr %s27, 3
          %s415 = smul.addr %s414, 128
          %s416 = scalar_lea.hbm %s3, %s415
          %s418 = sshll.u32 %s407, 4
          %s419 = int_to_ptr.vmem [resolvable:$true] %s418
          %421 = dma.vmem_to_hbm [thread:$0]  %s419, 384, %s416, %s404
        $region64: #{tpu_custom_call.1} parent=31 // pred_fallthru
          _
      $region32: #{tpu_custom_call.1} parent=5 // pred_fallthru
        _
      %p422 = scmp.le.s32.totalorder 2, %s18
      // Predicated region
      $region65: #{tpu_custom_call.1} parent=5 // pred_check
        %p423 = pneg %p422
      $region66: #{tpu_custom_call.1} parent=5 // pred_check_branch
        %425 = sbr.rel (%p423) target = $region68
      $region67: #{tpu_custom_call.1} parent=5 // pred_region
        %s426 = ssub.s32 %s18, 2
        // Predicated region
        $region69: #{tpu_custom_call.1} parent=67 // pred_check
          %p427 = pneg %p137
        $region70: #{tpu_custom_call.1} parent=67 // pred_check_branch
          %429 = sbr.rel (%p427) target = $region72
        $region71: #{tpu_custom_call.1} parent=67 // pred_region
          %s430 = sand.u32 %s122, 1
          %s431 = scalar_lea.sflag [#allocation6], %s430
          %s432 = sand.u32 %s122, 1
          %s433 = smul.addr %s432, 24
          %s434 = scalar_lea.vmem [#allocation9], %s433
          %435 = dma.done %s431, 384
        $region72: #{tpu_custom_call.1} parent=67 // pred_fallthru
          _
      $region68: #{tpu_custom_call.1} parent=5 // pred_fallthru
        _
    $region6: #{tpu_custom_call.1} parent=1 // loop_footer
      %s22 = sadd.s32 1, %s18
    $region7: #{tpu_custom_call.1} parent=1 // loop_footer_branch
      %17 = sbr.rel target = $region3
    $region8: #{tpu_custom_call.1} parent=1 // loop_exit
      _
    %436 = vsyncpa [#allocation5], 1
    %s437 = scalar_lea.sflag [#allocation5], 1
    %438 = vsyncpa %s437, 1
    %439 = vsyncpa [#allocation8], 1
    %s440 = scalar_lea.sflag [#allocation8], 1
    %441 = vsyncpa %s440, 1
    %442 = vsyncpa [#allocation6], 1
    %s443 = scalar_lea.sflag [#allocation6], 1
    %444 = vsyncpa %s443, 1

</llo_original>
